<compile_context>
chip_gen: v7x
topology: tpu7x:2x2x1
jax: 0.10.0
libtpu: 0.0.40
codegen_flags: <defaults>
</compile_context>

<pallas_src>
import jax
import jax.numpy as jnp
from jax import lax
from jax.experimental import pallas as pl
from jax.experimental.pallas import tpu as pltpu

TILE_N = 512                      # default node-axis tile (multiple of 8)
_VMEM_BUDGET_BYTES = 8 * 1024 * 1024   # ~2 double-buffered (in + out) f32 tiles


def _round_up(x, m):
    return ((x + m - 1) // m) * m


def _graph_norm_kernel(scale_ref, feat_ref, out_ref):
    # scale_ref: (tile, 1) f32   -- per-node 1/sqrt(#nodes in its graph)
    # feat_ref : (tile, D)       -- feature tile
    # Pure streaming multiply; implicit broadcast of the (tile, 1) scale.
    out_ref[...] = (feat_ref[...] * scale_ref[...]).astype(out_ref.dtype)


def _pick_tile(n, d, tile_n):
    # Per grid step VMEM ~= 2 double-buffered f32 tiles (feature in + out).
    bytes_per_row = max(d, 1) * 4
    max_rows = max(8, (_VMEM_BUDGET_BYTES // (4 * bytes_per_row)) // 8 * 8)
    tile = min(tile_n, max_rows)
    # Keep >= 2 grid steps when N allows so the "parallel" node axis feeds both
    # v7x TensorCores (also keeps the tile a multiple of 8).
    tile = min(tile, _round_up(pl.cdiv(n, 2), 8))
    return max(8, _round_up(tile, 8))


def graph_norm(feature, batch, *, tile_n=TILE_N):
    """feature: (N, D) float; batch: (N,) int graph assignment (>= 0). Returns (N, D)."""
    n, d = feature.shape
    batch = batch.astype(jnp.int32)

    # Per-node inverse scale: one O(N) scatter-add + gather in XLA (jit-safe:
    # graph ids are < N, so N segments is a static upper bound).
    counts = jnp.zeros((n,), jnp.float32).at[batch].add(1.0)
    inv_scale = lax.rsqrt(counts)[batch].reshape(n, 1)          # (N, 1) f32

    tile = _pick_tile(n, d, tile_n)
    grid = (pl.cdiv(n, tile),)

    return pl.pallas_call(
        _graph_norm_kernel,
        out_shape=jax.ShapeDtypeStruct((n, d), feature.dtype),
        grid_spec=pltpu.PrefetchScalarGridSpec(
            num_scalar_prefetch=0,
            grid=grid,
            in_specs=[
                pl.BlockSpec((tile, 1), lambda i: (i, 0)),   # per-node inv scale
                pl.BlockSpec((tile, d), lambda i: (i, 0)),   # feature tile
            ],
            out_specs=pl.BlockSpec((tile, d), lambda i: (i, 0)),
        ),
        compiler_params=pltpu.CompilerParams(
            dimension_semantics=("parallel",)),
    )(inv_scale, feature)


def graph_norm_ref(feature, batch):
    """Pure-JAX reference matching the PyTorch module (jit-friendly)."""
    n = feature.shape[0]
    counts = jnp.zeros((n,), jnp.float32).at[batch].add(1.0)
    norm = jnp.sqrt(counts)[batch].reshape(-1, 1)
    return feature / norm


if __name__ == "__main__":
    key = jax.random.PRNGKey(0)
    d = 128
    sizes = [23, 41, 7, 56, 12, 37, 24]          # 7 graphs, 200 nodes total
    n = sum(sizes)
    batch = jnp.concatenate(
        [jnp.full((s,), g, dtype=jnp.int32) for g, s in enumerate(sizes)])
    feature = jax.random.normal(key, (n, d), dtype=jnp.float32)

    # n=200 -> tile=104, grid of 2 steps with a ragged (clipped) last tile:
    # exercises both the multi-step "parallel" pipeline and block clipping.
    out = jax.block_until_ready(graph_norm(feature, batch))

    ref = graph_norm_ref(feature, batch)
    assert out.shape == (n, d)
    assert jnp.allclose(out, ref, atol=1e-5, rtol=1e-5)

    print("KERNEL_OK")
</pallas_src>

<mosaic_0001>
module attributes {stable_mosaic.version = 11 : i64} {
  func.func @_graph_norm_kernel(%arg0: i32, %arg1: memref<104x1xf32, #tpu.memory_space<vmem>>, %arg2: memref<104x128xf32, #tpu.memory_space<vmem>>, %arg3: memref<104x128xf32, #tpu.memory_space<vmem>>) attributes {dimension_semantics = [#tpu.dimension_semantics<parallel>], iteration_bounds = array<i64: 2>, scalar_prefetch = 0 : i64, scratch_operands = 0 : i64, tpu.core_type = #tpu.core_type<tc>, window_params = [{transform_indices = @transform_0, window_bounds = array<i64: 104, 1>}, {transform_indices = @transform_1, window_bounds = array<i64: 104, 128>}, {transform_indices = @transform_2, window_bounds = array<i64: 104, 128>}]} {
    %c0 = arith.constant 0 : index
    %c0_0 = arith.constant 0 : index
    %0 = vector.load %arg2[%c0, %c0_0] : memref<104x128xf32, #tpu.memory_space<vmem>>, vector<104x128xf32>
    %c0_1 = arith.constant 0 : index
    %c0_2 = arith.constant 0 : index
    %1 = vector.load %arg1[%c0_1, %c0_2] : memref<104x1xf32, #tpu.memory_space<vmem>>, vector<104x1xf32>
    %2 = vector.broadcast %1 : vector<104x1xf32> to vector<104x128xf32>
    %3 = arith.mulf %0, %2 : vector<104x128xf32>
    %c0_3 = arith.constant 0 : index
    %c0_4 = arith.constant 0 : index
    %4 = vector.load %arg3[%c0_3, %c0_4] : memref<104x128xf32, #tpu.memory_space<vmem>>, vector<104x128xf32>
    tpu.vector_store %arg3[%c0_3, %c0_4], %3 {strides = array<i32>} : memref<104x128xf32, #tpu.memory_space<vmem>>, vector<104x128xf32>,
    return
  }
  func.func @transform_0(%arg0: i32) -> (i32, i32) {
    %c0_i32 = arith.constant 0 : i32
    %c0_i32_0 = arith.constant 0 : i32
    return %arg0, %c0_i32 : i32, i32
  }
  func.func @transform_1(%arg0: i32) -> (i32, i32) {
    %c0_i32 = arith.constant 0 : i32
    %c0_i32_0 = arith.constant 0 : i32
    return %arg0, %c0_i32 : i32, i32
  }
  func.func @transform_2(%arg0: i32) -> (i32, i32) {
    %c0_i32 = arith.constant 0 : i32
    %c0_i32_0 = arith.constant 0 : i32
    return %arg0, %c0_i32 : i32, i32
  }
}

</mosaic_0001>

<llo_original>
// kernel: tpu_custom_call.1
$region0: #{tpu_custom_call.1}
  #allocation0 [shape = 'u32[]', space=smem, size = 0x4, offset = 0x4, fixed_abs, tag = 'smem constant byte address 0x4 - core index']
  #allocation1 [shape = 'u32[144,128]{1,0:T(1,128)}', space=vmem, size = 0x12000, scoped, tag = 'internal scratch']
  %s0 = inlined_call_operand.vmem [shape: f32[200,1], index: 0, kind: input, shape index: {}]
  %s1 = inlined_call_operand.vmem [shape: f32[200,128], index: 1, kind: input, shape index: {}]
  %s2 = inlined_call_operand.hbm [shape: f32[200,128], index: 2, kind: output, shape index: {}]
  %s3 = sld [smem:[#allocation0]]
  $region41: #{tpu_custom_call.1} parent=0
    _
  %s5 = ssub.s32 1, %s3
  %s6 = scalar_select 0, %s5, %s3
  $region1: #{tpu_custom_call.1} parent=0
    #allocation2 [shape = 'u8[106496]{0}', space=vmem, size = 0x1a000, scoped, tag = 'output window, operand 0']
    #allocation3 [shape = 's32[2]{0}', space=sflag, size = 0x8, scoped, tag = 'scoped memory for tpu_custom_call.1']
    %7 = vsyncpa [#allocation3], 0
    %s8 = scalar_lea.sflag [#allocation3], 1
    %9 = vsyncpa %s8, 0
    loop: start=0, step=1, limit=4
    $region2: #{tpu_custom_call.1} parent=1 // loop_pre_header
      _
    $region3: #{tpu_custom_call.1} parent=1 // loop_header
      %s11 = sphi 0, %s15
      %p12 = scmp.ge.s32.totalorder %s11, 4
      %s21 = sphi 0, %s23
      %s24 = sphi 0, %s21
      %s25 = sphi 0, %s24
      %s41 = sphi 0, %s25
      %s47 = sphi 0, %s49
      %s50 = sphi 0, %s47
      %s51 = sphi 0, %s50
      %s67 = sphi 0, %s51
      %s73 = sphi 0, %s75
      %s76 = sphi 0, %s73
      %s77 = sphi 0, %s76
      %s93 = sphi 0, %s77
    $region4: #{tpu_custom_call.1} parent=1 // loop_header_branch
      %14 = sbr.rel (%p12) target = $region8
    $region5: #{tpu_custom_call.1} parent=1 // loop_body
      %s16 = ssub.s32 %s11, 1
      %s17 = ssub.s32 %s11, 2
      %s18 = sadd.s32 %s11, 1
      %s19 = ssub.s32 %s11, %s18
      %p20 = scmp.eq.s32.totalorder %s19, 0
      %s22 = sadd.s32 %s21, 1
      %s23 = scalar_select %p20, %s21, %s22
      %p26 = pneg %p20
      %p27 = scmp.eq.s32.totalorder %s11, 1
      %p28 = por %p26, %p27
      %p29 = scmp.ne.s32.totalorder %s21, %s24
      %p30 = scmp.eq.s32.totalorder %s11, 0
      %p31 = por %p29, %p30
      %p32 = scmp.ne.s32.totalorder %s21, %s24
      %p33 = scmp.eq.s32.totalorder %s16, 1
      %p34 = por %p32, %p33
      %p35 = scmp.ne.s32.totalorder %s24, %s25
      %p36 = scmp.eq.s32.totalorder %s16, 0
      %p37 = por %p35, %p36
      %p38 = scmp.ne.s32.totalorder %s24, %s25
      %p39 = scmp.eq.s32.totalorder %s17, 1
      %p40 = por %p38, %p39
      %p42 = scmp.ne.s32.totalorder %s25, %s41
      %p43 = scmp.eq.s32.totalorder %s17, 0
      %p44 = por %p42, %p43
      %s45 = ssub.s32 %s11, %s18
      %p46 = scmp.eq.s32.totalorder %s45, 0
      %s48 = sadd.s32 %s47, 1
      %s49 = scalar_select %p46, %s47, %s48
      %p52 = pneg %p46
      %p53 = scmp.eq.s32.totalorder %s11, 1
      %p54 = por %p52, %p53
      %p55 = scmp.ne.s32.totalorder %s47, %s50
      %p56 = scmp.eq.s32.totalorder %s11, 0
      %p57 = por %p55, %p56
      %p58 = scmp.ne.s32.totalorder %s47, %s50
      %p59 = scmp.eq.s32.totalorder %s16, 1
      %p60 = por %p58, %p59
      %p61 = scmp.ne.s32.totalorder %s50, %s51
      %p62 = scmp.eq.s32.totalorder %s16, 0
      %p63 = por %p61, %p62
      %p64 = scmp.ne.s32.totalorder %s50, %s51
      %p65 = scmp.eq.s32.totalorder %s17, 1
      %p66 = por %p64, %p65
      %p68 = scmp.ne.s32.totalorder %s51, %s67
      %p69 = scmp.eq.s32.totalorder %s17, 0
      %p70 = por %p68, %p69
      %s71 = ssub.s32 %s11, %s18
      %p72 = scmp.eq.s32.totalorder %s71, 0
      %s74 = sadd.s32 %s73, 1
      %s75 = scalar_select %p72, %s73, %s74
      %p78 = pneg %p72
      %p79 = scmp.eq.s32.totalorder %s11, 1
      %p80 = por %p78, %p79
      %p81 = scmp.ne.s32.totalorder %s73, %s76
      %p82 = scmp.eq.s32.totalorder %s11, 0
      %p83 = por %p81, %p82
      %p84 = scmp.ne.s32.totalorder %s73, %s76
      %p85 = scmp.eq.s32.totalorder %s16, 1
      %p86 = por %p84, %p85
      %p87 = scmp.ne.s32.totalorder %s76, %s77
      %p88 = scmp.eq.s32.totalorder %s16, 0
      %p89 = por %p87, %p88
      %p90 = scmp.ne.s32.totalorder %s76, %s77
      %p91 = scmp.eq.s32.totalorder %s17, 1
      %p92 = por %p90, %p91
      %p94 = scmp.ne.s32.totalorder %s77, %s93
      %p95 = scmp.eq.s32.totalorder %s17, 0
      %p96 = por %p94, %p95
      %p97 = scmp.le.s32.totalorder 1, %s11
      %p98 = scmp.lt.s32.totalorder %s11, 3
      %p99 = pnand %p97, %p98
      %p100 = pneg %p99
      // Predicated region
      $region9: #{tpu_custom_call.1} parent=5 // pred_check
        _
      $region10: #{tpu_custom_call.1} parent=5 // pred_check_branch
        %102 = sbr.rel (%p99) target = $region12
      $region11: #{tpu_custom_call.1} parent=5 // pred_region
        %s103 = ssub.s32 %s11, 1
      $region12: #{tpu_custom_call.1} parent=5 // pred_fallthru
        _
      %p104 = scmp.lt.s32.totalorder %s11, 2
      // Predicated region
      $region13: #{tpu_custom_call.1} parent=5 // pred_check
        %p105 = pneg %p104
      $region14: #{tpu_custom_call.1} parent=5 // pred_check_branch
        %107 = sbr.rel (%p105) target = $region16
      $region15: #{tpu_custom_call.1} parent=5 // pred_region
        // Predicated region
        $region17: #{tpu_custom_call.1} parent=15 // pred_check
          %p108 = pneg %p31
        $region18: #{tpu_custom_call.1} parent=15 // pred_check_branch
          %110 = sbr.rel (%p108) target = $region20
        $region19: #{tpu_custom_call.1} parent=15 // pred_region
          %s111 = smul.u32 13, %s11
          %s112 = ssub.s32 25, %s111
          %p113 = scmp.lt.s32.totalorder %s112, 13
          %s114 = scalar_select %p113, %s112, 13
          %s115 = smul.u32 128, %s114
          %p116 = scmp.lt.s32.totalorder %s111, 24
          %s117 = scalar_select %p116, %s111, 24
          %s118 = smul.addr %s117, 8
          %s119 = scalar_lea.vmem %s0, %s118
          %s120 = smul.u32 13, %s11
          %s121 = ssub.s32 25, %s120
          %p122 = scmp.lt.s32.totalorder %s121, 13
          %s123 = scalar_select %p122, %s121, 13
          %s124 = smul.u32 128, %s123
        $region20: #{tpu_custom_call.1} parent=15 // pred_fallthru
          _
        // Predicated region
        $region21: #{tpu_custom_call.1} parent=15 // pred_check
          %p125 = pneg %p57
        $region22: #{tpu_custom_call.1} parent=15 // pred_check_branch
          %127 = sbr.rel (%p125) target = $region24
        $region23: #{tpu_custom_call.1} parent=15 // pred_region
          %s128 = smul.u32 13, %s11
          %s129 = ssub.s32 25, %s128
          %p130 = scmp.lt.s32.totalorder %s129, 13
          %s131 = scalar_select %p130, %s129, 13
          %s132 = smul.u32 128, %s131
          %p133 = scmp.lt.s32.totalorder %s128, 24
          %s134 = scalar_select %p133, %s128, 24
          %s135 = smul.addr %s134, 8
          %s136 = scalar_lea.vmem %s1, %s135
          %s137 = smul.u32 13, %s11
          %s138 = ssub.s32 25, %s137
          %p139 = scmp.lt.s32.totalorder %s138, 13
          %s140 = scalar_select %p139, %s138, 13
          %s141 = smul.u32 128, %s140
        $region24: #{tpu_custom_call.1} parent=15 // pred_fallthru
          _
      $region16: #{tpu_custom_call.1} parent=5 // pred_fallthru
        _
      %p142 = scmp.le.s32.totalorder 1, %s11
      %p143 = scmp.lt.s32.totalorder %s11, 3
      %p144 = pnand %p142, %p143
      %p145 = pneg %p144
      // Predicated region
      $region25: #{tpu_custom_call.1} parent=5 // pred_check
        _
      $region26: #{tpu_custom_call.1} parent=5 // pred_check_branch
        %147 = sbr.rel (%p144) target = $region28
      $region27: #{tpu_custom_call.1} parent=5 // pred_region
        %s148 = ssub.s32 %s11, 1
        %s149 = smul.u32 13, %s16
        %s150 = ssub.s32 25, %s149
        %p151 = scmp.lt.s32.totalorder %s150, 13
        %s152 = scalar_select %p151, %s150, 13
        %s153 = smul.u32 128, %s152
        %p154 = scmp.lt.s32.totalorder %s149, 24
        %s155 = scalar_select %p154, %s149, 24
        %s156 = smul.addr %s155, 8
        %s157 = scalar_lea.vmem %s0, %s156
        %p158 = pneg %p37
        %p159 = pneg %p34
        %s160 = smul.u32 13, %s16
        %s161 = ssub.s32 25, %s160
        %p162 = scmp.lt.s32.totalorder %s161, 13
        %s163 = scalar_select %p162, %s161, 13
        %s164 = smul.u32 128, %s163
        %p165 = scmp.lt.s32.totalorder %s160, 24
        %s166 = scalar_select %p165, %s160, 24
        %s167 = smul.addr %s166, 8
        %s168 = scalar_lea.vmem %s1, %s167
        %p169 = pneg %p63
        %p170 = pneg %p60
        %p171 = pneg %p89
        %p172 = pneg %p86
        %s173 = sand.u32 %s76, 1
        %s174 = scalar_lea.sflag [#allocation3], %s173
        %s175 = sand.u32 %s76, 1
        %s176 = smul.addr %s175, 104
        %s177 = scalar_lea.vmem [#allocation2], %s176
        %s178 = smul.u32 13, %s16
        %s179 = ssub.s32 25, %s178
        %p180 = scmp.lt.s32.totalorder %s179, 13
        %s181 = scalar_select %p180, %s179, 13
        %s182 = smul.u32 128, %s181
        %p183 = scmp.lt.s32.totalorder %s178, 24
        %s184 = scalar_select %p183, %s178, 24
        %s185 = smul.addr %s184, 8
        %s186 = scalar_lea.vmem %s0, %s185
        %s187 = smul.u32 13, %s16
        %s188 = ssub.s32 25, %s187
        %p189 = scmp.lt.s32.totalorder %s188, 13
        %s190 = scalar_select %p189, %s188, 13
        %s191 = smul.u32 128, %s190
        %s192 = smul.u32 13, %s16
        %s193 = ssub.s32 25, %s192
        %p194 = scmp.lt.s32.totalorder %s193, 13
        %s195 = scalar_select %p194, %s193, 13
        %s196 = smul.u32 128, %s195
        %p197 = scmp.lt.s32.totalorder %s192, 24
        %s198 = scalar_select %p197, %s192, 24
        %s199 = smul.addr %s198, 8
        %s200 = scalar_lea.vmem %s1, %s199
        %s201 = smul.u32 13, %s16
        %s202 = ssub.s32 25, %s201
        %p203 = scmp.lt.s32.totalorder %s202, 13
        %s204 = scalar_select %p203, %s202, 13
        %s205 = smul.u32 128, %s204
        %s206 = smul.u32 13, %s16
        %s207 = ssub.s32 25, %s206
        %p208 = scmp.lt.s32.totalorder %s207, 13
        %s209 = scalar_select %p208, %s207, 13
        %s210 = smul.u32 128, %s209
        %v211 = vld [vmem:[%s200] sm:$0xff]
        %v212 = vld [vmem:[%s200 + $0x8] sm:$0xff]
        %v213 = vld [vmem:[%s200 + $0x10] sm:$0xff]
        %v214 = vld [vmem:[%s200 + $0x18] sm:$0xff]
        %v215 = vld [vmem:[%s200 + $0x20] sm:$0xff]
        %v216 = vld [vmem:[%s200 + $0x28] sm:$0xff]
        %v217 = vld [vmem:[%s200 + $0x30] sm:$0xff]
        %v218 = vld [vmem:[%s200 + $0x38] sm:$0xff]
        %v219 = vld [vmem:[%s200 + $0x40] sm:$0xff]
        %v220 = vld [vmem:[%s200 + $0x48] sm:$0xff]
        %v221 = vld [vmem:[%s200 + $0x50] sm:$0xff]
        %v222 = vld [vmem:[%s200 + $0x58] sm:$0xff]
        %v223 = vld [vmem:[%s200 + $0x60] sm:$0xff]
        %v224 = vld [vmem:[%s186] sm:$0xff]
        %v225 = vld [vmem:[%s186 + $0x8] sm:$0xff]
        %v226 = vld [vmem:[%s186 + $0x10] sm:$0xff]
        %v227 = vld [vmem:[%s186 + $0x18] sm:$0xff]
        %v228 = vld [vmem:[%s186 + $0x20] sm:$0xff]
        %v229 = vld [vmem:[%s186 + $0x28] sm:$0xff]
        %v230 = vld [vmem:[%s186 + $0x30] sm:$0xff]
        %v231 = vld [vmem:[%s186 + $0x38] sm:$0xff]
        %v232 = vld [vmem:[%s186 + $0x40] sm:$0xff]
        %v233 = vld [vmem:[%s186 + $0x48] sm:$0xff]
        %v234 = vld [vmem:[%s186 + $0x50] sm:$0xff]
        %v235 = vld [vmem:[%s186 + $0x58] sm:$0xff]
        %v236 = vld [vmem:[%s186 + $0x60] sm:$0xff]
        %238 = vset.pattern.permute.xlu0 0
        %239 = vperm.xlu0 %238, %v224
        %v240 = vpop.permute.xlu0 %239
        %243 = vset.pattern.permute.xlu0 0
        %244 = vperm.xlu0 %243, %v225
        %v245 = vpop.permute.xlu0 %244
        %248 = vset.pattern.permute.xlu0 0
        %249 = vperm.xlu0 %248, %v226
        %v250 = vpop.permute.xlu0 %249
        %253 = vset.pattern.permute.xlu0 0
        %254 = vperm.xlu0 %253, %v227
        %v255 = vpop.permute.xlu0 %254
        %258 = vset.pattern.permute.xlu0 0
        %259 = vperm.xlu0 %258, %v228
        %v260 = vpop.permute.xlu0 %259
        %263 = vset.pattern.permute.xlu0 0
        %264 = vperm.xlu0 %263, %v229
        %v265 = vpop.permute.xlu0 %264
        %268 = vset.pattern.permute.xlu0 0
        %269 = vperm.xlu0 %268, %v230
        %v270 = vpop.permute.xlu0 %269
        %273 = vset.pattern.permute.xlu0 0
        %274 = vperm.xlu0 %273, %v231
        %v275 = vpop.permute.xlu0 %274
        %278 = vset.pattern.permute.xlu0 0
        %279 = vperm.xlu0 %278, %v232
        %v280 = vpop.permute.xlu0 %279
        %283 = vset.pattern.permute.xlu0 0
        %284 = vperm.xlu0 %283, %v233
        %v285 = vpop.permute.xlu0 %284
        %288 = vset.pattern.permute.xlu0 0
        %289 = vperm.xlu0 %288, %v234
        %v290 = vpop.permute.xlu0 %289
        %293 = vset.pattern.permute.xlu0 0
        %294 = vperm.xlu0 %293, %v235
        %v295 = vpop.permute.xlu0 %294
        %298 = vset.pattern.permute.xlu0 0
        %299 = vperm.xlu0 %298, %v236
        %v300 = vpop.permute.xlu0 %299
        %v302 = vmul.f32 %v211, %v240
        %v303 = vmul.f32 %v212, %v245
        %v304 = vmul.f32 %v213, %v250
        %v305 = vmul.f32 %v214, %v255
        %v306 = vmul.f32 %v215, %v260
        %v307 = vmul.f32 %v216, %v265
        %v308 = vmul.f32 %v217, %v270
        %v309 = vmul.f32 %v218, %v275
        %v310 = vmul.f32 %v219, %v280
        %v311 = vmul.f32 %v220, %v285
        %v312 = vmul.f32 %v221, %v290
        %v313 = vmul.f32 %v222, %v295
        %v314 = vmul.f32 %v223, %v300
        %315 = vst [vmem:[%s177] sm:$0xff] %v302
        %316 = vst [vmem:[%s177 + $0x8] sm:$0xff] %v303
        %317 = vst [vmem:[%s177 + $0x10] sm:$0xff] %v304
        %318 = vst [vmem:[%s177 + $0x18] sm:$0xff] %v305
        %319 = vst [vmem:[%s177 + $0x20] sm:$0xff] %v306
        %320 = vst [vmem:[%s177 + $0x28] sm:$0xff] %v307
        %321 = vst [vmem:[%s177 + $0x30] sm:$0xff] %v308
        %322 = vst [vmem:[%s177 + $0x38] sm:$0xff] %v309
        %323 = vst [vmem:[%s177 + $0x40] sm:$0xff] %v310
        %324 = vst [vmem:[%s177 + $0x48] sm:$0xff] %v311
        %325 = vst [vmem:[%s177 + $0x50] sm:$0xff] %v312
        %326 = vst [vmem:[%s177 + $0x58] sm:$0xff] %v313
        %327 = vst [vmem:[%s177 + $0x60] sm:$0xff] %v314
        %s328 = sand.u32 %s76, 1
        %s329 = scalar_lea.sflag [#allocation3], %s328
        %s330 = sand.u32 %s76, 1
        %s331 = smul.addr %s330, 104
        %s332 = scalar_lea.vmem [#allocation2], %s331
        // Predicated region
        $region29: #{tpu_custom_call.1} parent=27 // pred_check
          %p333 = pneg %p86
        $region30: #{tpu_custom_call.1} parent=27 // pred_check_branch
          %335 = sbr.rel (%p333) target = $region32
        $region31: #{tpu_custom_call.1} parent=27 // pred_region
          %s336 = smul.u32 13, %s16
          %s337 = ssub.s32 25, %s336
          %p338 = scmp.lt.s32.totalorder %s337, 13
          %s339 = scalar_select %p338, %s337, 13
          %s340 = smul.u32 128, %s339
          %s342 = ssub.s32 1664, %s340
          %343 = vsyncadd %s329, %s342
          %p344 = scmp.ne.s32.totalorder 0, %s340
          %s345 = smul.addr %s336, 128
          %s346 = scalar_lea.hbm %s2, %s345
          %s347 = smul.u32 8, %s339
          %s348 = sshll.u32 %s332, 4
          %s349 = int_to_ptr.vmem [resolvable:$true] %s348
          %s350 = sshll.u32 %s347, 4
          %354 = dma.vmem_to_hbm [thread:$0]  (%p344), %s349, %s350, %s346, %s329, 128, 128, 8
        $region32: #{tpu_custom_call.1} parent=27 // pred_fallthru
          _
      $region28: #{tpu_custom_call.1} parent=5 // pred_fallthru
        _
      %p355 = scmp.le.s32.totalorder 2, %s11
      // Predicated region
      $region33: #{tpu_custom_call.1} parent=5 // pred_check
        %p356 = pneg %p355
      $region34: #{tpu_custom_call.1} parent=5 // pred_check_branch
        %358 = sbr.rel (%p356) target = $region36
      $region35: #{tpu_custom_call.1} parent=5 // pred_region
        %s359 = ssub.s32 %s11, 2
        // Predicated region
        $region37: #{tpu_custom_call.1} parent=35 // pred_check
          %p360 = pneg %p92
        $region38: #{tpu_custom_call.1} parent=35 // pred_check_branch
          %362 = sbr.rel (%p360) target = $region40
        $region39: #{tpu_custom_call.1} parent=35 // pred_region
          %s363 = sand.u32 %s77, 1
          %s364 = scalar_lea.sflag [#allocation3], %s363
          %s365 = sand.u32 %s77, 1
          %s366 = smul.addr %s365, 104
          %s367 = scalar_lea.vmem [#allocation2], %s366
          %368 = dma.done %s364, 1664
        $region40: #{tpu_custom_call.1} parent=35 // pred_fallthru
          _
      $region36: #{tpu_custom_call.1} parent=5 // pred_fallthru
        _
    $region6: #{tpu_custom_call.1} parent=1 // loop_footer
      %s15 = sadd.s32 1, %s11
    $region7: #{tpu_custom_call.1} parent=1 // loop_footer_branch
      %10 = sbr.rel target = $region3
    $region8: #{tpu_custom_call.1} parent=1 // loop_exit
      _
    %369 = vsyncpa [#allocation3], 1
    %s370 = scalar_lea.sflag [#allocation3], 1
    %371 = vsyncpa %s370, 1

</llo_original>
